<compile_context>
chip_gen: v7x
topology: tpu7x:2x2x1
jax: 0.10.0
libtpu: 0.0.40
codegen_flags: <defaults>
</compile_context>

<pallas_src>
import math

import jax
import jax.numpy as jnp
from jax.experimental import pallas as pl
from jax.experimental.pallas import tpu as pltpu


def _scale_kernel(x_ref, s_ref, o_ref):
    # x_ref: (tile_b, Dw) block; s_ref: (1, Dw) row broadcast over sublanes (VPU).
    # Multiply in the promoted dtype, cast only the result (PyTorch promotion).
    o_ref[...] = (x_ref[...] * s_ref[...]).astype(o_ref.dtype)


def _sublane_multiple(dtype) -> int:
    # f32 -> 8, bf16 -> 16, int8/fp8 -> 32 (packed sublanes).
    return max(8, 32 // jnp.dtype(dtype).itemsize)


def _round_up(a: int, m: int) -> int:
    return ((a + m - 1) // m) * m


def _vmem_params() -> tuple[int, int]:
    """(per-buffer block byte target, vmem_limit cap) chosen per TPU generation."""
    cap = 128 << 20
    try:
        cap = int(pltpu.get_tpu_info().vmem_capacity_bytes)
    except Exception:
        pass  # conservative fallback: assume a 128 MiB part
    if cap <= (64 << 20):
        # v7x-class: 64 MiB physical per TC (32 MiB scoped default) -> stay lean.
        return (2 << 20, 24 << 20)
    # v5e / v6e: 128 MiB physical -> bigger blocks, fewer grid steps.
    return (4 << 20, 48 << 20)


def _fold_and_pad(B: int, D: int, *, max_lanes: int = 16384) -> tuple[int, int]:
    """Pick (k, B_pad) with B_pad % k == 0 and (k*D) % 128 == 0 (lane-dense stores).

    Pads B up to a multiple of `base` when needed (padding < base rows) so the
    fold is always possible, except for very large D where k*D would exceed
    the lane cap; that rare case falls back to k=1 (masked stores, correct).
    """
    if D % 128 == 0:
        return 1, B
    base = 128 // math.gcd(D, 128)
    if base * D > max_lanes:
        return 1, B  # TODO(synk): masked-store fallback for huge odd D
    B_pad = _round_up(B, base)
    k = base
    while B_pad % (2 * k) == 0 and (2 * k) * D <= max_lanes:
        k *= 2
    return k, B_pad


def _auto_tile_rows(Bw: int, Dw: int, itemsize: int, sub: int,
                    block_bytes_target: int) -> int:
    """Rows per block sized by bytes (~block_bytes_target per buffer), sub-aligned."""
    if Bw <= sub:
        return Bw
    row_bytes = Dw * itemsize
    t = max(sub, block_bytes_target // row_bytes)
    t = max(sub, (t // sub) * sub)
    cap = max(sub, (Bw // sub) * sub)  # keep tile sub-aligned; cdiv grid pads the tail
    return int(min(t, cap))


def _balance_steps(Bw: int, tile_b: int, sub: int) -> int:
    """Ensure >= 2 grid steps (and an even count for short grids) for v7x's 2 TCs."""
    if Bw <= sub:
        return tile_b
    steps = pl.cdiv(Bw, tile_b)
    if steps < 2:
        tile_b = max(sub, _round_up(pl.cdiv(Bw, 2), sub))
    elif steps < 8 and steps % 2 == 1:
        cand = max(sub, _round_up(pl.cdiv(Bw, steps + 1), sub))
        if pl.cdiv(Bw, cand) % 2 == 0:
            tile_b = cand
    return int(min(tile_b, Bw))


def scale_layer(x: jax.Array, scale: jax.Array, *,
                tile_b: int | None = None,
                input_buffer_count: int | None = None,
                alias_input: bool = False) -> jax.Array:
    """Elementwise x * scale with scale broadcast over the batch axis.

    x:     (B, D)
    scale: (D,)   (the ScaleLayer nn.Parameter init_value)
    """
    B, D = x.shape
    out_dtype = jnp.result_type(x.dtype, scale.dtype)
    x_item = jnp.dtype(x.dtype).itemsize
    o_item = jnp.dtype(out_dtype).itemsize
    sub = _sublane_multiple(x.dtype)

    # Lane-dense re-view: (B_pad, D) -> (B_pad/k, k*D) with (k*D) % 128 == 0.
    k, B_pad = _fold_and_pad(B, D)
    if B_pad != B:
        x = jnp.pad(x, ((0, B_pad - B), (0, 0)))
    Bw, Dw = B_pad // k, k * D
    xw = x.reshape(Bw, Dw)
    sw = jnp.tile(scale.astype(out_dtype).reshape(-1), (k,)).reshape(1, Dw)

    block_target, vmem_cap = _vmem_params()
    if tile_b is None:
        tile_b = _auto_tile_rows(Bw, Dw, x_item, sub, block_target)
    tile_b = int(min(max(int(tile_b), 1), Bw))
    tile_b = _balance_steps(Bw, tile_b, sub)
    grid = (pl.cdiv(Bw, tile_b),)

    # Double-buffered input + output blocks plus the (sublane-padded) scale row.
    in_bytes = tile_b * Dw * x_item
    out_bytes = tile_b * Dw * o_item
    vmem_limit = 2 * (in_bytes + out_bytes) + 2 * 8 * Dw * o_item + (2 << 20)
    vmem_limit = int(min(max(vmem_limit, 4 << 20), vmem_cap))

    x_spec = pl.BlockSpec((tile_b, Dw), lambda i: (i, 0))
    if input_buffer_count is not None and input_buffer_count != 2:
        try:  # deeper input buffering for very small blocks / long grids (sweepable)
            x_spec = pl.BlockSpec((tile_b, Dw), lambda i: (i, 0),
                                  pipeline_mode=pl.Buffered(int(input_buffer_count)))
        except TypeError:
            pass  # older jax: keep default double-buffering

    # Aliasing the input HBM buffer avoids a second (Bw, Dw) allocation when the
    # caller donates x; only valid when dtypes match (no promotion).
    io_aliases = {0: 0} if (alias_input and out_dtype == x.dtype) else {}

    out = pl.pallas_call(
        _scale_kernel,
        out_shape=jax.ShapeDtypeStruct((Bw, Dw), out_dtype),
        grid_spec=pltpu.PrefetchScalarGridSpec(
            num_scalar_prefetch=0,
            grid=grid,
            in_specs=[
                x_spec,
                # scale: same (1, Dw) block every grid step -> stays VMEM-resident
                pl.BlockSpec((1, Dw), lambda i: (0, 0)),
            ],
            out_specs=pl.BlockSpec((tile_b, Dw), lambda i: (i, 0)),
        ),
        compiler_params=pltpu.CompilerParams(
            dimension_semantics=("parallel",),
            vmem_limit_bytes=vmem_limit,
        ),
        input_output_aliases=io_aliases,
    )(xw, sw)

    out = out.reshape(B_pad, D)
    if B_pad != B:
        out = out[:B]
    return out


if __name__ == "__main__":
    key = jax.random.PRNGKey(0)

    # 1) Small shape consistent with ScaleLayer: (batch, features) + per-feature scale.
    #    D=32 exercises the lane-dense fold path (k=8, Dw=256).
    B, D = 8, 32
    x = jax.random.normal(key, (B, D), dtype=jnp.float32)
    scale = 0.5 + 0.1 * jnp.arange(D, dtype=jnp.float32)  # deterministic init_value
    out = jax.block_until_ready(scale_layer(x, scale))
    ref = x * scale[None, :]
    assert out.shape == ref.shape and out.dtype == ref.dtype
    assert jnp.allclose(out, ref, atol=1e-6, rtol=1e-6), "mismatch vs reference"

    # 2) Lane-dense D, batch not a multiple of the tile: pl.cdiv grid, >=2 steps.
    B2, D2 = 10, 256
    x2 = jax.random.normal(jax.random.PRNGKey(1), (B2, D2), dtype=jnp.float32)
    scale2 = jnp.linspace(0.1, 2.0, D2, dtype=jnp.float32)
    out2 = jax.block_until_ready(scale_layer(x2, scale2))
    assert jnp.allclose(out2, x2 * scale2[None, :], atol=1e-6, rtol=1e-6), "mismatch (cdiv path)"

    # 3) Padded-batch fold (B % base != 0) + dtype promotion (bf16 input, f32 scale).
    B3, D3 = 13, 32
    x3 = jax.random.normal(jax.random.PRNGKey(2), (B3, D3), dtype=jnp.bfloat16)
    scale3 = jnp.linspace(0.25, 1.5, D3, dtype=jnp.float32)
    out3 = jax.block_until_ready(scale_layer(x3, scale3))
    ref3 = x3.astype(jnp.float32) * scale3[None, :]
    assert out3.shape == ref3.shape and out3.dtype == ref3.dtype
    assert jnp.allclose(out3, ref3, atol=1e-5, rtol=1e-5), "mismatch (padded fold / promotion)"

    print("KERNEL_OK")
</pallas_src>

<mosaic_0001>
module attributes {stable_mosaic.version = 11 : i64} {
  func.func @_scale_kernel(%arg0: i32, %arg1: memref<1x256xf32, #tpu.memory_space<vmem>>, %arg2: memref<1x256xf32, #tpu.memory_space<vmem>>, %arg3: memref<1x256xf32, #tpu.memory_space<vmem>>) attributes {dimension_semantics = [#tpu.dimension_semantics<parallel>], iteration_bounds = array<i64: 1>, scalar_prefetch = 0 : i64, scratch_operands = 0 : i64, tpu.core_type = #tpu.core_type<tc>, window_params = [{transform_indices = @transform_0, window_bounds = array<i64: 1, 256>}, {pipeline_mode = #tpu.pipeline_mode<synchronous>, transform_indices = @transform_1, window_bounds = array<i64: 1, 256>}, {transform_indices = @transform_2, window_bounds = array<i64: 1, 256>}]} {
    %c0 = arith.constant 0 : index
    %c0_0 = arith.constant 0 : index
    %0 = vector.load %arg1[%c0, %c0_0] : memref<1x256xf32, #tpu.memory_space<vmem>>, vector<1x256xf32>
    %c0_1 = arith.constant 0 : index
    %c0_2 = arith.constant 0 : index
    %1 = vector.load %arg2[%c0_1, %c0_2] : memref<1x256xf32, #tpu.memory_space<vmem>>, vector<1x256xf32>
    %2 = arith.mulf %0, %1 : vector<1x256xf32>
    %c0_3 = arith.constant 0 : index
    %c0_4 = arith.constant 0 : index
    %3 = vector.load %arg3[%c0_3, %c0_4] : memref<1x256xf32, #tpu.memory_space<vmem>>, vector<1x256xf32>
    tpu.vector_store %arg3[%c0_3, %c0_4], %2 {strides = array<i32>} : memref<1x256xf32, #tpu.memory_space<vmem>>, vector<1x256xf32>,
    return
  }
  func.func @transform_0(%arg0: i32) -> (i32, i32) {
    %c0_i32 = arith.constant 0 : i32
    %c0_i32_0 = arith.constant 0 : i32
    return %arg0, %c0_i32 : i32, i32
  }
  func.func @transform_1(%arg0: i32) -> (i32, i32) {
    %c0_i32 = arith.constant 0 : i32
    %c0_i32_0 = arith.constant 0 : i32
    %c0_i32_1 = arith.constant 0 : i32
    return %c0_i32, %c0_i32_0 : i32, i32
  }
  func.func @transform_2(%arg0: i32) -> (i32, i32) {
    %c0_i32 = arith.constant 0 : i32
    %c0_i32_0 = arith.constant 0 : i32
    return %arg0, %c0_i32 : i32, i32
  }
}

</mosaic_0001>

<llo_original>
// kernel: tpu_custom_call.1
$region0: #{tpu_custom_call.1}
  #allocation0 [shape = 'u32[]', space=smem, size = 0x4, offset = 0x4, fixed_abs, tag = 'smem constant byte address 0x4 - core index']
  #allocation1 [shape = 'u32[144,128]{1,0:T(1,128)}', space=vmem, size = 0x12000, scoped, tag = 'internal scratch']
  %s0 = inlined_call_operand.hbm [shape: f32[1,256], index: 0, kind: input, shape index: {}]
  %s1 = inlined_call_operand.vmem [shape: f32[1,256], index: 1, kind: input, shape index: {}]
  %s2 = inlined_call_operand.hbm [shape: f32[1,256], index: 2, kind: output, shape index: {}]
  %s3 = sld [smem:[#allocation0]]
  $region22: #{tpu_custom_call.1} parent=0
    _
  %s5 = ssub.s32 1, %s3
  %s6 = scalar_select 0, %s5, %s3
  $region1: #{tpu_custom_call.1} parent=0
    #allocation2 [shape = 'u8[1024]{0}', space=vmem, size = 0x400, scoped, tag = 'input window, operand 0, single buffered']
    #allocation3 [shape = 's32[1]{0}', space=sflag, size = 0x4, scoped, tag = 'scoped memory for tpu_custom_call.1']
    #allocation4 [shape = 's32[1]{0}', space=sflag, size = 0x4, scoped, tag = 'scoped memory for tpu_custom_call.1']
    #allocation5 [shape = 'u8[1024]{0}', space=vmem, size = 0x400, scoped, tag = 'output window, operand 0, single buffered']
    %7 = vsyncpa [#allocation3], 0
    %8 = vsyncpa [#allocation4], 0
    // Predicated region
    $region2: #{tpu_custom_call.1} parent=1 // pred_check
      _
    $region3: #{tpu_custom_call.1} parent=1 // pred_check_branch
      %10 = sbr.rel (0) target = $region5
    $region4: #{tpu_custom_call.1} parent=1 // pred_region
      %s12 = ssub.s32 32, 32
      %13 = vsyncadd [#allocation3], %s12
      %s15 = sshll.u32 [#allocation2], 4
      %s16 = int_to_ptr.vmem [resolvable:$true] %s15
      %18 = dma.hbm_to_vmem [thread:$0]  %s0, 32, %s16, [#allocation3]
    $region5: #{tpu_custom_call.1} parent=1 // pred_fallthru
      _
    // Predicated region
    $region6: #{tpu_custom_call.1} parent=1 // pred_check
      _
    $region7: #{tpu_custom_call.1} parent=1 // pred_check_branch
      %20 = sbr.rel (0) target = $region9
    $region8: #{tpu_custom_call.1} parent=1 // pred_region
      _
    $region9: #{tpu_custom_call.1} parent=1 // pred_fallthru
      _
    // Predicated region
    $region10: #{tpu_custom_call.1} parent=1 // pred_check
      _
    $region11: #{tpu_custom_call.1} parent=1 // pred_check_branch
      %22 = sbr.rel (0) target = $region13
    $region12: #{tpu_custom_call.1} parent=1 // pred_region
      %23 = dma.done [#allocation3], 32
    $region13: #{tpu_custom_call.1} parent=1 // pred_fallthru
      _
    %v24 = vld [vmem:[#allocation2] sm:$0x3]
    %v25 = vld [vmem:[%s1] sm:$0x3]
    %v26 = vmul.f32 %v24, %v25
    %v27 = vlaneseq
    %vm28 = vcmp.ge.s32.totalorder %v27, 0
    %vm29 = vcmp.lt.s32.totalorder %v27, 256
    %vm30 = vmand %vm28, %vm29
    %31 = vst.msk [vmem:[#allocation5] sm:$0x3] %vm30, %v26
    // Predicated region
    $region14: #{tpu_custom_call.1} parent=1 // pred_check
      _
    $region15: #{tpu_custom_call.1} parent=1 // pred_check_branch
      %33 = sbr.rel (0) target = $region17
    $region16: #{tpu_custom_call.1} parent=1 // pred_region
      %s35 = ssub.s32 32, 32
      %36 = vsyncadd [#allocation4], %s35
      %s38 = sshll.u32 [#allocation5], 4
      %s39 = int_to_ptr.vmem [resolvable:$true] %s38
      %41 = dma.vmem_to_hbm [thread:$0]  %s39, 32, %s2, [#allocation4]
    $region17: #{tpu_custom_call.1} parent=1 // pred_fallthru
      _
    // Predicated region
    $region18: #{tpu_custom_call.1} parent=1 // pred_check
      _
    $region19: #{tpu_custom_call.1} parent=1 // pred_check_branch
      %43 = sbr.rel (0) target = $region21
    $region20: #{tpu_custom_call.1} parent=1 // pred_region
      %44 = dma.done [#allocation4], 32
    $region21: #{tpu_custom_call.1} parent=1 // pred_fallthru
      _
    %45 = vsyncpa [#allocation3], 1
    %46 = vsyncpa [#allocation4], 1

</llo_original>
